<compile_context>
chip_gen: v7x
topology: tpu7x:2x2x1
jax: 0.10.0
libtpu: 0.0.40
codegen_flags: <defaults>
</compile_context>

<pallas_src>
import functools

import jax
import jax.numpy as jnp
from jax.experimental import pallas as pl
from jax.experimental.pallas import tpu as pltpu


def _gen_style_kernel(z_ref, y_ref, w1_ref, b1_ref, sR_ref, g2wT_ref,
                      bn_w_ref, bn_b_ref, ypk_out, xrec_out, *, z_dim):
    Z = z_dim
    z = z_ref[...].astype(jnp.float32)                    # (B, Z)
    y = y_ref[...].astype(jnp.float32)                    # (B, Y)

    # ---- fused shared-LHS matmul: columns = [tmp_L | y_mu | y_var_pre | pad] ----
    fused = jnp.dot(y, w1_ref[...],
                    preferred_element_type=jnp.float32) + b1_ref[...]      # (B, P)

    tmp_L = fused[:, :Z]                                  # prefix slice (lane offset 0)

    # softplus only on the y_var section (lanes >= 2Z); pad lanes are ignored by the
    # wrapper so applying it there too is harmless.  log1p form for precision.
    lane = jax.lax.broadcasted_iota(jnp.int32, fused.shape, dimension=1)
    sp = jnp.maximum(fused, 0.0) + jnp.log1p(jnp.exp(-jnp.abs(fused)))
    ypk_out[...] = jnp.where(lane >= 2 * Z, sp, fused)    # single lane-dense store

    # ---- pxz ----
    # g1: softmax(z, axis=1)
    zc = z - jnp.max(z, axis=1, keepdims=True)
    ez = jnp.exp(zc)
    zs = ez * pl.reciprocal(jnp.sum(ez, axis=1, keepdims=True), approx=True)

    tmp_R = jnp.dot(y, sR_ref[...], preferred_element_type=jnp.float32)    # (B, X)

    # folded gamma contraction: (B, X) = tmp_R * ((zs * tmp_L) @ W2^T)
    x_pre = tmp_R * jnp.dot(zs * tmp_L, g2wT_ref[...],
                            preferred_element_type=jnp.float32)

    # g3: BatchNorm1d, training mode (batch stats, biased variance), eps=1e-3.
    inv_b = 1.0 / x_pre.shape[0]
    mean = jnp.sum(x_pre, axis=0, keepdims=True) * inv_b
    diff = x_pre - mean
    var = jnp.sum(diff * diff, axis=0, keepdims=True) * inv_b
    x_bn = diff * jax.lax.rsqrt(var + 0.001) * bn_w_ref[...] + bn_b_ref[...]

    # g4: softmax(x_bn, axis=1)
    xc = x_bn - jnp.max(x_bn, axis=1, keepdims=True)
    ex = jnp.exp(xc)
    xrec_out[...] = ex * pl.reciprocal(jnp.sum(ex, axis=1, keepdims=True), approx=True)


def prepare_params(params):
    """One-time weight prep: transpose, fuse and lane-pad the y-side weights."""
    z_dim = params["y_mu_weight"].shape[0]
    x_dim = params["g2_weight"].shape[0]

    # Fused RHS for the shared-LHS matmul: [style_L | Wmu^T | Wvar^T], zero-padded to a
    # multiple of 128 lanes so the packed output store is unmasked.
    w1 = jnp.concatenate([params["style_L"],
                          params["y_mu_weight"].T,
                          params["y_var_weight"].T], axis=1)               # (Y, 3Z)
    b1 = jnp.concatenate([jnp.zeros((z_dim,), jnp.float32),
                          params["y_mu_bias"],
                          params["y_var_bias"]])                           # (3Z,)
    pack = 128 * (-(-(3 * z_dim) // 128))
    pad = pack - 3 * z_dim
    if pad:
        w1 = jnp.pad(w1, ((0, 0), (0, pad)))
        b1 = jnp.pad(b1, (0, pad))

    return {
        "w1": w1,                                        # (Y, pack)
        "b1": b1.reshape(1, pack),                       # (1, pack)
        "style_R": params["style_R"],                    # (Y, X)
        "g2w_t": params["g2_weight"].T,                  # (Z, X)
        "bn_w": params["bn_weight"].reshape(1, x_dim),
        "bn_b": params["bn_bias"].reshape(1, x_dim),
        "z_dim": int(z_dim),
        "x_dim": int(x_dim),
    }


@functools.partial(jax.jit, static_argnames=("z_dim", "x_dim"))
def _forward(z, y, w1, b1, style_R, g2w_t, bn_w, bn_b, *, z_dim, x_dim):
    B = z.shape[0]
    pack = w1.shape[1]
    vmem = pl.BlockSpec(memory_space=pltpu.MemorySpace.VMEM)
    y_packed, x_rec = pl.pallas_call(
        functools.partial(_gen_style_kernel, z_dim=z_dim),
        out_shape=(
            jax.ShapeDtypeStruct((B, pack), jnp.float32),   # [tmp_L | y_mu | y_var | pad]
            jax.ShapeDtypeStruct((B, x_dim), jnp.float32),  # x_rec
        ),
        in_specs=[vmem] * 8,
        out_specs=(vmem, vmem),
    )(z, y, w1, b1, style_R, g2w_t, bn_w, bn_b)

    return {
        "y_mean": y_packed[:, z_dim:2 * z_dim],
        "y_var": y_packed[:, 2 * z_dim:3 * z_dim],
        "x_rec": x_rec,
    }


def generative_net_style_forward(z, y, prepared):
    """z: (B, z_dim), y: (B, y_dim). Returns dict with 'y_mean', 'y_var', 'x_rec'."""
    return _forward(z, y, prepared["w1"], prepared["b1"], prepared["style_R"],
                    prepared["g2w_t"], prepared["bn_w"], prepared["bn_b"],
                    z_dim=prepared["z_dim"], x_dim=prepared["x_dim"])


def init_params(key, x_dim, z_dim, y_dim):
    k1, k2, k3, k4, k5 = jax.random.split(key, 5)
    return {
        # nn.Linear(y_dim, z_dim): weight (z_dim, y_dim), bias (z_dim,)
        "y_mu_weight": jax.random.normal(k1, (z_dim, y_dim), jnp.float32) * 0.1,
        "y_mu_bias": jax.random.normal(k2, (z_dim,), jnp.float32) * 0.1,
        "y_var_weight": jax.random.normal(k3, (z_dim, y_dim), jnp.float32) * 0.1,
        "y_var_bias": jax.random.normal(k4, (z_dim,), jnp.float32) * 0.1,
        # nn.Linear(z_dim, x_dim, bias=False): weight (x_dim, z_dim)
        "g2_weight": jax.random.normal(k5, (x_dim, z_dim), jnp.float32) * 0.1,
        # nn.Parameter(torch.ones(...))
        "style_L": jnp.ones((y_dim, z_dim), jnp.float32),
        "style_R": jnp.ones((y_dim, x_dim), jnp.float32),
        # BatchNorm1d affine params (PyTorch init: weight=1, bias=0)
        "bn_weight": jnp.ones((x_dim,), jnp.float32),
        "bn_bias": jnp.zeros((x_dim,), jnp.float32),
    }


def _reference_forward(z, y, params):
    """Literal (unfused) pure-JAX translation of the PyTorch module, for checking."""
    y_mu = y @ params["y_mu_weight"].T + params["y_mu_bias"]
    y_var = jax.nn.softplus(y @ params["y_var_weight"].T + params["y_var_bias"])
    zs = jax.nn.softmax(z, axis=1)
    tmp_L = y @ params["style_L"]                       # (B, Z)
    tmp_R = y @ params["style_R"]                       # (B, X)
    gamma = tmp_R[:, :, None] * tmp_L[:, None, :]       # (B, X, Z)
    new_w = params["g2_weight"][None, :, :] * gamma     # (B, X, Z)
    x_pre = jnp.einsum("bxz,bz->bx", new_w, zs)         # (B, X)
    mean = jnp.mean(x_pre, axis=0, keepdims=True)
    var = jnp.mean((x_pre - mean) ** 2, axis=0, keepdims=True)
    x_bn = (x_pre - mean) * jax.lax.rsqrt(var + 0.001) * params["bn_weight"] + params["bn_bias"]
    x_rec = jax.nn.softmax(x_bn, axis=1)
    return {"y_mean": y_mu, "y_var": y_var, "x_rec": x_rec}


if __name__ == "__main__":
    key = jax.random.PRNGKey(0)
    kz, ky, kp = jax.random.split(key, 3)

    B, x_dim, z_dim, y_dim = 8, 16, 32, 8
    z = jax.random.normal(kz, (B, z_dim), jnp.float32)
    y = jax.nn.softmax(jax.random.normal(ky, (B, y_dim), jnp.float32), axis=1)

    params = init_params(kp, x_dim, z_dim, y_dim)
    prepared = prepare_params(params)          # one-time: transpose/fuse/pad weights

    out = generative_net_style_forward(z, y, prepared)
    jax.block_until_ready(out)

    assert out["y_mean"].shape == (B, z_dim)
    assert out["y_var"].shape == (B, z_dim)
    assert out["x_rec"].shape == (B, x_dim)

    ref = _reference_forward(z, y, params)
    for k in ("y_mean", "y_var", "x_rec"):
        assert jnp.allclose(out[k], ref[k], rtol=2e-3, atol=2e-3), k

    print("KERNEL_OK")
</pallas_src>

<mosaic_0001>
module attributes {stable_mosaic.version = 11 : i64} {
  func.func @_gen_style_kernel(%arg0: memref<8x32xf32, #tpu.memory_space<vmem>>, %arg1: memref<8x8xf32, #tpu.memory_space<vmem>>, %arg2: memref<8x128xf32, #tpu.memory_space<vmem>>, %arg3: memref<1x128xf32, #tpu.memory_space<vmem>>, %arg4: memref<8x16xf32, #tpu.memory_space<vmem>>, %arg5: memref<32x16xf32, #tpu.memory_space<vmem>>, %arg6: memref<1x16xf32, #tpu.memory_space<vmem>>, %arg7: memref<1x16xf32, #tpu.memory_space<vmem>>, %arg8: memref<8x128xf32, #tpu.memory_space<vmem>>, %arg9: memref<8x16xf32, #tpu.memory_space<vmem>>) attributes {dimension_semantics = [], scalar_prefetch = 0 : i64, scratch_operands = 0 : i64, tpu.core_type = #tpu.core_type<tc>} {
    %c0 = arith.constant 0 : index
    %c0_0 = arith.constant 0 : index
    %0 = vector.load %arg0[%c0, %c0_0] : memref<8x32xf32, #tpu.memory_space<vmem>>, vector<8x32xf32>
    %c0_1 = arith.constant 0 : index
    %c0_2 = arith.constant 0 : index
    %1 = vector.load %arg1[%c0_1, %c0_2] : memref<8x8xf32, #tpu.memory_space<vmem>>, vector<8x8xf32>
    %c0_3 = arith.constant 0 : index
    %c0_4 = arith.constant 0 : index
    %2 = vector.load %arg2[%c0_3, %c0_4] : memref<8x128xf32, #tpu.memory_space<vmem>>, vector<8x128xf32>
    %cst = arith.constant dense<0.000000e+00> : vector<8x128xf32>
    %3 = tpu.matmul %1, %2, %cst {dimension_numbers = #tpu.dot_dimension_numbers<[1], [0], [0], [1], [0, 0, 1, 1], [], []>} : vector<8x8xf32>, vector<8x128xf32>, vector<8x128xf32> -> vector<8x128xf32>
    %c0_5 = arith.constant 0 : index
    %c0_6 = arith.constant 0 : index
    %4 = vector.load %arg3[%c0_5, %c0_6] : memref<1x128xf32, #tpu.memory_space<vmem>>, vector<1x128xf32>
    %5 = vector.broadcast %4 : vector<1x128xf32> to vector<8x128xf32>
    %6 = arith.addf %3, %5 : vector<8x128xf32>
    %7 = vector.extract_strided_slice %6 {offsets = [0, 0], sizes = [8, 32], strides = [1, 1]} : vector<8x128xf32> to vector<8x32xf32>
    %8 = tpu.iota {dimensions = array<i32: 1>} : vector<8x128xi32>
    %cst_7 = arith.constant 0.000000e+00 : f32
    %9 = vector.broadcast %cst_7 : f32 to vector<8x128xf32>
    %10 = arith.maximumf %6, %9 : vector<8x128xf32>
    %11 = math.absf %6 : vector<8x128xf32>
    %cst_8 = arith.constant 0.000000e+00 : f32
    %12 = vector.broadcast %cst_8 : f32 to vector<8x128xf32>
    %13 = arith.subf %12, %11 : vector<8x128xf32>
    %14 = math.exp %13 : vector<8x128xf32>
    %15 = math.log1p %14 : vector<8x128xf32>
    %16 = arith.addf %10, %15 : vector<8x128xf32>
    %c64_i32 = arith.constant 64 : i32
    %17 = vector.broadcast %c64_i32 : i32 to vector<8x128xi32>
    %18 = arith.cmpi sge, %8, %17 : vector<8x128xi32>
    %19 = arith.select %18, %16, %6 : vector<8x128xi1>, vector<8x128xf32>
    %c0_9 = arith.constant 0 : index
    %c0_10 = arith.constant 0 : index
    %20 = vector.load %arg8[%c0_9, %c0_10] : memref<8x128xf32, #tpu.memory_space<vmem>>, vector<8x128xf32>
    tpu.vector_store %arg8[%c0_9, %c0_10], %19 {strides = array<i32>} : memref<8x128xf32, #tpu.memory_space<vmem>>, vector<8x128xf32>,
    %cst_11 = arith.constant dense<0xFF800000> : vector<8xf32>
    %21 = vector.multi_reduction <maximumf>, %0, %cst_11 [1] : vector<8x32xf32> to vector<8xf32>
    %22 = vector.shape_cast %21 : vector<8xf32> to vector<8x1xf32>
    %23 = vector.broadcast %22 : vector<8x1xf32> to vector<8x32xf32>
    %24 = arith.subf %0, %23 : vector<8x32xf32>
    %25 = math.exp %24 : vector<8x32xf32>
    %cst_12 = arith.constant dense<0.000000e+00> : vector<8xf32>
    %26 = vector.multi_reduction <add>, %25, %cst_12 [1] : vector<8x32xf32> to vector<8xf32>
    %27 = vector.shape_cast %26 : vector<8xf32> to vector<8x1xf32>
    %28 = tpu.reciprocal %27 {approx = true} : vector<8x1xf32> -> vector<8x1xf32>
    %29 = vector.broadcast %28 : vector<8x1xf32> to vector<8x32xf32>
    %30 = arith.mulf %25, %29 : vector<8x32xf32>
    %c0_13 = arith.constant 0 : index
    %c0_14 = arith.constant 0 : index
    %31 = vector.load %arg4[%c0_13, %c0_14] : memref<8x16xf32, #tpu.memory_space<vmem>>, vector<8x16xf32>
    %cst_15 = arith.constant dense<0.000000e+00> : vector<8x16xf32>
    %32 = tpu.matmul %1, %31, %cst_15 {dimension_numbers = #tpu.dot_dimension_numbers<[1], [0], [0], [1], [0, 0, 1, 1], [], []>} : vector<8x8xf32>, vector<8x16xf32>, vector<8x16xf32> -> vector<8x16xf32>
    %33 = arith.mulf %30, %7 : vector<8x32xf32>
    %c0_16 = arith.constant 0 : index
    %c0_17 = arith.constant 0 : index
    %34 = vector.load %arg5[%c0_16, %c0_17] : memref<32x16xf32, #tpu.memory_space<vmem>>, vector<32x16xf32>
    %cst_18 = arith.constant dense<0.000000e+00> : vector<8x16xf32>
    %35 = tpu.matmul %33, %34, %cst_18 {dimension_numbers = #tpu.dot_dimension_numbers<[1], [0], [0], [1], [0, 0, 1, 1], [], []>} : vector<8x32xf32>, vector<32x16xf32>, vector<8x16xf32> -> vector<8x16xf32>
    %36 = arith.mulf %32, %35 : vector<8x16xf32>
    %cst_19 = arith.constant dense<0.000000e+00> : vector<16xf32>
    %37 = vector.multi_reduction <add>, %36, %cst_19 [0] : vector<8x16xf32> to vector<16xf32>
    %38 = vector.shape_cast %37 : vector<16xf32> to vector<1x16xf32>
    %cst_20 = arith.constant 1.250000e-01 : f32
    %39 = vector.broadcast %cst_20 : f32 to vector<1x16xf32>
    %40 = arith.mulf %38, %39 : vector<1x16xf32>
    %41 = vector.broadcast %40 : vector<1x16xf32> to vector<8x16xf32>
    %42 = arith.subf %36, %41 : vector<8x16xf32>
    %43 = arith.mulf %42, %42 : vector<8x16xf32>
    %cst_21 = arith.constant dense<0.000000e+00> : vector<16xf32>
    %44 = vector.multi_reduction <add>, %43, %cst_21 [0] : vector<8x16xf32> to vector<16xf32>
    %45 = vector.shape_cast %44 : vector<16xf32> to vector<1x16xf32>
    %cst_22 = arith.constant 1.250000e-01 : f32
    %46 = vector.broadcast %cst_22 : f32 to vector<1x16xf32>
    %47 = arith.mulf %45, %46 : vector<1x16xf32>
    %cst_23 = arith.constant 1.000000e-03 : f32
    %48 = vector.broadcast %cst_23 : f32 to vector<1x16xf32>
    %49 = arith.addf %47, %48 : vector<1x16xf32>
    %50 = math.rsqrt %49 : vector<1x16xf32>
    %51 = vector.broadcast %50 : vector<1x16xf32> to vector<8x16xf32>
    %52 = arith.mulf %42, %51 : vector<8x16xf32>
    %c0_24 = arith.constant 0 : index
    %c0_25 = arith.constant 0 : index
    %53 = vector.load %arg6[%c0_24, %c0_25] : memref<1x16xf32, #tpu.memory_space<vmem>>, vector<1x16xf32>
    %54 = vector.broadcast %53 : vector<1x16xf32> to vector<8x16xf32>
    %55 = arith.mulf %52, %54 : vector<8x16xf32>
    %c0_26 = arith.constant 0 : index
    %c0_27 = arith.constant 0 : index
    %56 = vector.load %arg7[%c0_26, %c0_27] : memref<1x16xf32, #tpu.memory_space<vmem>>, vector<1x16xf32>
    %57 = vector.broadcast %56 : vector<1x16xf32> to vector<8x16xf32>
    %58 = arith.addf %55, %57 : vector<8x16xf32>
    %cst_28 = arith.constant dense<0xFF800000> : vector<8xf32>
    %59 = vector.multi_reduction <maximumf>, %58, %cst_28 [1] : vector<8x16xf32> to vector<8xf32>
    %60 = vector.shape_cast %59 : vector<8xf32> to vector<8x1xf32>
    %61 = vector.broadcast %60 : vector<8x1xf32> to vector<8x16xf32>
    %62 = arith.subf %58, %61 : vector<8x16xf32>
    %63 = math.exp %62 : vector<8x16xf32>
    %cst_29 = arith.constant dense<0.000000e+00> : vector<8xf32>
    %64 = vector.multi_reduction <add>, %63, %cst_29 [1] : vector<8x16xf32> to vector<8xf32>
    %65 = vector.shape_cast %64 : vector<8xf32> to vector<8x1xf32>
    %66 = tpu.reciprocal %65 {approx = true} : vector<8x1xf32> -> vector<8x1xf32>
    %67 = vector.broadcast %66 : vector<8x1xf32> to vector<8x16xf32>
    %68 = arith.mulf %63, %67 : vector<8x16xf32>
    %c0_30 = arith.constant 0 : index
    %c0_31 = arith.constant 0 : index
    %69 = vector.load %arg9[%c0_30, %c0_31] : memref<8x16xf32, #tpu.memory_space<vmem>>, vector<8x16xf32>
    tpu.vector_store %arg9[%c0_30, %c0_31], %68 {strides = array<i32>} : memref<8x16xf32, #tpu.memory_space<vmem>>, vector<8x16xf32>,
    return
  }
}

</mosaic_0001>

<llo_original>
// kernel: _forward.1
$region0: #{_forward.1}
  #allocation0 [shape = 'u32[]', space=smem, size = 0x4, offset = 0x4, fixed_abs, tag = 'smem constant byte address 0x4 - core index']
  #allocation1 [shape = 'u32[144,128]{1,0:T(1,128)}', space=vmem, size = 0x12000, scoped, tag = 'internal scratch']
  %s0 = inlined_call_operand.vmem [shape: f32[8,32], index: 0, kind: input, shape index: {}]
  %s1 = inlined_call_operand.vmem [shape: f32[8,8], index: 1, kind: input, shape index: {}]
  %s2 = inlined_call_operand.vmem [shape: f32[8,128], index: 2, kind: input, shape index: {}]
  %s3 = inlined_call_operand.vmem [shape: f32[1,128], index: 3, kind: input, shape index: {}]
  %s4 = inlined_call_operand.vmem [shape: f32[8,16], index: 4, kind: input, shape index: {}]
  %s5 = inlined_call_operand.vmem [shape: f32[32,16], index: 5, kind: input, shape index: {}]
  %s6 = inlined_call_operand.vmem [shape: f32[1,16], index: 6, kind: input, shape index: {}]
  %s7 = inlined_call_operand.vmem [shape: f32[1,16], index: 7, kind: input, shape index: {}]
  %s8 = inlined_call_operand.vmem [shape: f32[8,128], index: 8, kind: output, shape index: {0}]
  %s9 = inlined_call_operand.hbm [shape: f32[8,16], index: 9, kind: output, shape index: {1}]
  %10 = xla_tuple %s8, %s9
  %s11 = sld [smem:[#allocation0]]
  $region50: #{_forward.1} parent=0
    _
  %s13 = ssub.s32 1, %s11
  %s14 = scalar_select 0, %s13, %s11
  $region1: #{_forward.1} parent=0
    #allocation2 [shape = 'u8[4096]{0}', space=vmem, size = 0x1000, scoped, tag = 'output window, operand 1, single buffered']
    #allocation3 [shape = 's32[1]{0}', space=sflag, size = 0x4, scoped, tag = 'scoped memory for _forward.1']
    %15 = vsyncpa [#allocation3], 0
    // Predicated region
    $region2: #{_forward.1} parent=1 // pred_check
      _
    $region3: #{_forward.1} parent=1 // pred_check_branch
      %17 = sbr.rel (0) target = $region5
    $region4: #{_forward.1} parent=1 // pred_region
      _
    $region5: #{_forward.1} parent=1 // pred_fallthru
      _
    // Predicated region
    $region6: #{_forward.1} parent=1 // pred_check
      _
    $region7: #{_forward.1} parent=1 // pred_check_branch
      %19 = sbr.rel (0) target = $region9
    $region8: #{_forward.1} parent=1 // pred_region
      _
    $region9: #{_forward.1} parent=1 // pred_fallthru
      _
    // Predicated region
    $region10: #{_forward.1} parent=1 // pred_check
      _
    $region11: #{_forward.1} parent=1 // pred_check_branch
      %21 = sbr.rel (0) target = $region13
    $region12: #{_forward.1} parent=1 // pred_region
      _
    $region13: #{_forward.1} parent=1 // pred_fallthru
      _
    // Predicated region
    $region14: #{_forward.1} parent=1 // pred_check
      _
    $region15: #{_forward.1} parent=1 // pred_check_branch
      %23 = sbr.rel (0) target = $region17
    $region16: #{_forward.1} parent=1 // pred_region
      _
    $region17: #{_forward.1} parent=1 // pred_fallthru
      _
    // Predicated region
    $region18: #{_forward.1} parent=1 // pred_check
      _
    $region19: #{_forward.1} parent=1 // pred_check_branch
      %25 = sbr.rel (0) target = $region21
    $region20: #{_forward.1} parent=1 // pred_region
      _
    $region21: #{_forward.1} parent=1 // pred_fallthru
      _
    // Predicated region
    $region22: #{_forward.1} parent=1 // pred_check
      _
    $region23: #{_forward.1} parent=1 // pred_check_branch
      %27 = sbr.rel (0) target = $region25
    $region24: #{_forward.1} parent=1 // pred_region
      _
    $region25: #{_forward.1} parent=1 // pred_fallthru
      _
    // Predicated region
    $region26: #{_forward.1} parent=1 // pred_check
      _
    $region27: #{_forward.1} parent=1 // pred_check_branch
      %29 = sbr.rel (0) target = $region29
    $region28: #{_forward.1} parent=1 // pred_region
      _
    $region29: #{_forward.1} parent=1 // pred_fallthru
      _
    // Predicated region
    $region30: #{_forward.1} parent=1 // pred_check
      _
    $region31: #{_forward.1} parent=1 // pred_check_branch
      %31 = sbr.rel (0) target = $region33
    $region32: #{_forward.1} parent=1 // pred_region
      _
    $region33: #{_forward.1} parent=1 // pred_fallthru
      _
    %v32 = vld [vmem:[%s0] sm:$0xff]
    %v33 = vld [vmem:[%s1] sm:$0xff]
    %v34 = vld [vmem:[%s2] sm:$0xff]
    %v35 = vld [vmem:[%s3] sm:$0x1]
    %v37 = vlaneseq
    %v38 = vshrl.u32 %v37, 7
    %v39 = vsub.s32 0, %v38
    %v40 = vrot.slane %v35, %v39
    %vm42 = vcmask 64512
    %v44 = vsel %vm42, %v33, 0
    %46 = vmatprep.subr.mxu0 0.0
    %47 = vmatpush1.msra.mxu0 %v34
    %48 = vmatprep.subr.mxu0 0.0
    %49 = vmatpush1.msra.mxu0 0.0
    %50 = vmatprep.subr.mxu0 0.0
    %51 = vmatpush1.msra.mxu0 0.0
    %52 = vmatprep.subr.mxu0 0.0
    %53 = vmatpush1.msra.mxu0 0.0
    %54 = vmatprep.subr.mxu0 0.0
    %55 = vmatpush1.msra.mxu0 0.0
    %56 = vmatprep.subr.mxu0 0.0
    %57 = vmatpush1.msra.mxu0 0.0
    %58 = vmatprep.subr.mxu0 0.0
    %59 = vmatpush1.msra.mxu0 0.0
    %60 = vmatprep.subr.mxu0 0.0
    %61 = vmatpush1.msra.mxu0 0.0
    %62 = vmatprep.subr.mxu0 0.0
    %63 = vmatpush1.msra.mxu0 0.0
    %64 = vmatprep.subr.mxu0 0.0
    %65 = vmatpush1.msra.mxu0 0.0
    %66 = vmatprep.subr.mxu0 0.0
    %67 = vmatpush1.msra.mxu0 0.0
    %68 = vmatprep.subr.mxu0 0.0
    %69 = vmatpush1.msra.mxu0 0.0
    %70 = vmatprep.subr.mxu0 0.0
    %71 = vmatpush1.msra.mxu0 0.0
    %72 = vmatprep.subr.mxu0 0.0
    %73 = vmatpush1.msra.mxu0 0.0
    %74 = vmatprep.subr.mxu0 0.0
    %75 = vmatpush1.msra.mxu0 0.0
    %76 = vmatprep.subr.mxu0 0.0
    %77 = vmatpush1.msra.mxu0 0.0
    %78 = vmatprep.subr.mxu0 0.0
    %79 = vmatpush1.msra.mxu0 0.0
    %80 = vmatprep.subr.mxu0 0.0
    %81 = vmatpush1.msra.mxu0 0.0
    %82 = vmatprep.subr.mxu0 0.0
    %83 = vmatpush1.msra.mxu0 0.0
    %84 = vmatprep.subr.mxu0 0.0
    %85 = vmatpush1.msra.mxu0 0.0
    %86 = vmatprep.subr.mxu0 0.0
    %87 = vmatpush1.msra.mxu0 0.0
    %88 = vmatprep.subr.mxu0 0.0
    %89 = vmatpush1.msra.mxu0 0.0
    %90 = vmatprep.subr.mxu0 0.0
    %91 = vmatpush1.msra.mxu0 0.0
    %92 = vmatprep.subr.mxu0 0.0
    %93 = vmatpush1.msra.mxu0 0.0
    %94 = vmatprep.subr.mxu0 0.0
    %95 = vmatpush1.msra.mxu0 0.0
    %96 = vmatprep.subr.mxu0 0.0
    %97 = vmatpush1.msra.mxu0 0.0
    %98 = vmatprep.subr.mxu0 0.0
    %99 = vmatpush1.msra.mxu0 0.0
    %100 = vmatprep.subr.mxu0 0.0
    %101 = vmatpush1.msra.mxu0 0.0
    %102 = vmatprep.subr.mxu0 0.0
    %103 = vmatpush1.msra.mxu0 0.0
    %104 = vmatprep.subr.mxu0 0.0
    %105 = vmatpush1.msra.mxu0 0.0
    %106 = vmatprep.subr.mxu0 0.0
    %107 = vmatpush1.msra.mxu0 0.0
    %108 = vmatprep.subr.mxu0 0.0
    %109 = vmatpush1.msra.mxu0 0.0
    %110 = vmatprep.mubr.f32.mxu0 0.0
    %111 = vmatmul.mubr.f32.gmra.mrb[0].mxu0 %v44
    %v112 = vpop.f32.mrb[0].mxu0
    %v113 = vadd.f32 %v40, %v112
    %v114 = vpop.f32.mrb[0].mxu0
    %115 = vdwg.mxu0
    %v116 = vlaneseq
    %v117 = vand.u32 %v116, 127
    %v118 = vmax.f32 %v113, 0.0
    %v119 = vand.u32 2147483647, %v113
    %v120 = vsub.f32 0.0, %v119
    %v121 = vmul.f32 %v120, 1.442695
    %v122 = vpow.pop %v121
    %v123 = vadd.f32 %v122, 1.0
    %v124 = vlog2.pop %v123
    %v125 = vmul.f32 %v124, 0.6931472
    %v126 = vmul.f32 -0.5, %v122
    %v127 = vadd.f32 %v126, 1.0
    %v128 = vmul.f32 %v127, %v122
    %v129 = vand.u32 2147483647, %v122
    %vm130 = vcmp.lt.f32.partialorder %v129, 0.0004427343
    %v131 = vsel %vm130, %v128, %v125
    %v132 = vadd.f32 %v118, %v131
    %vm133 = vcmp.ge.s32.totalorder %v117, 64
    %v134 = vsel %vm133, %v132, %v113
    %135 = vst [vmem:[%s8] sm:$0xff] %v134
    %vm136 = vcmask 261120
    %v137 = vsel %vm136, %v32, -inf
    %138 = vmax.xlane.f32.xlu0 %v137
    %v139 = vpop.xlane.xlu0 %138
    %v140 = vsub.f32 %v32, %v139
    %v141 = vmul.f32 %v140, 1.442695
    %v142 = vpow.pop %v141
    %v143 = vsel %vm136, %v142, 0.0
    %144 = vadd.xlane.f32.xlu0 %v143
    %v145 = vpop.xlane.xlu0 %144
    %v146 = vrcp.pop %v145
    %v147 = vmul.f32 %v142, %v146
    %v148 = vld [vmem:[%s4] sm:$0xff]
    %149 = vmatprep.subr.mxu0 0.0
    %150 = vmatpush1.msra.mxu0 %v148
    %151 = vmatprep.subr.mxu0 0.0
    %152 = vmatpush1.msra.mxu0 0.0
    %153 = vmatprep.subr.mxu0 0.0
    %154 = vmatpush1.msra.mxu0 0.0
    %155 = vmatprep.subr.mxu0 0.0
    %156 = vmatpush1.msra.mxu0 0.0
    %157 = vmatprep.subr.mxu0 0.0
    %158 = vmatpush1.msra.mxu0 0.0
    %159 = vmatprep.subr.mxu0 0.0
    %160 = vmatpush1.msra.mxu0 0.0
    %161 = vmatprep.subr.mxu0 0.0
    %162 = vmatpush1.msra.mxu0 0.0
    %163 = vmatprep.subr.mxu0 0.0
    %164 = vmatpush1.msra.mxu0 0.0
    %165 = vmatprep.subr.mxu0 0.0
    %166 = vmatpush1.msra.mxu0 0.0
    %167 = vmatprep.subr.mxu0 0.0
    %168 = vmatpush1.msra.mxu0 0.0
    %169 = vmatprep.subr.mxu0 0.0
    %170 = vmatpush1.msra.mxu0 0.0
    %171 = vmatprep.subr.mxu0 0.0
    %172 = vmatpush1.msra.mxu0 0.0
    %173 = vmatprep.subr.mxu0 0.0
    %174 = vmatpush1.msra.mxu0 0.0
    %175 = vmatprep.subr.mxu0 0.0
    %176 = vmatpush1.msra.mxu0 0.0
    %177 = vmatprep.subr.mxu0 0.0
    %178 = vmatpush1.msra.mxu0 0.0
    %179 = vmatprep.subr.mxu0 0.0
    %180 = vmatpush1.msra.mxu0 0.0
    %181 = vmatprep.subr.mxu0 0.0
    %182 = vmatpush1.msra.mxu0 0.0
    %183 = vmatprep.subr.mxu0 0.0
    %184 = vmatpush1.msra.mxu0 0.0
    %185 = vmatprep.subr.mxu0 0.0
    %186 = vmatpush1.msra.mxu0 0.0
    %187 = vmatprep.subr.mxu0 0.0
    %188 = vmatpush1.msra.mxu0 0.0
    %189 = vmatprep.subr.mxu0 0.0
    %190 = vmatpush1.msra.mxu0 0.0
    %191 = vmatprep.subr.mxu0 0.0
    %192 = vmatpush1.msra.mxu0 0.0
    %193 = vmatprep.subr.mxu0 0.0
    %194 = vmatpush1.msra.mxu0 0.0
    %195 = vmatprep.subr.mxu0 0.0
    %196 = vmatpush1.msra.mxu0 0.0
    %197 = vmatprep.subr.mxu0 0.0
    %198 = vmatpush1.msra.mxu0 0.0
    %199 = vmatprep.subr.mxu0 0.0
    %200 = vmatpush1.msra.mxu0 0.0
    %201 = vmatprep.subr.mxu0 0.0
    %202 = vmatpush1.msra.mxu0 0.0
    %203 = vmatprep.subr.mxu0 0.0
    %204 = vmatpush1.msra.mxu0 0.0
    %205 = vmatprep.subr.mxu0 0.0
    %206 = vmatpush1.msra.mxu0 0.0
    %207 = vmatprep.subr.mxu0 0.0
    %208 = vmatpush1.msra.mxu0 0.0
    %209 = vmatprep.subr.mxu0 0.0
    %210 = vmatpush1.msra.mxu0 0.0
    %211 = vmatprep.subr.mxu0 0.0
    %212 = vmatpush1.msra.mxu0 0.0
    %213 = vmatprep.mubr.f32.mxu0 0.0
    %214 = vmatmul.mubr.f32.gmra.mrb[0].mxu0 %v44
    %v215 = vpop.f32.mrb[0].mxu0
    %v216 = vadd.f32 0.0, %v215
    %v217 = vpop.f32.mrb[0].mxu0
    %218 = vdwg.mxu0
    %v219 = vmul.f32 %v147, %v113
    %v220 = vld [vmem:[%s5] sm:$0xff]
    %v221 = vld [vmem:[%s5 + $0x8] sm:$0xff]
    %v222 = vld [vmem:[%s5 + $0x10] sm:$0xff]
    %v223 = vld [vmem:[%s5 + $0x18] sm:$0xff]
    %v225 = vsel %vm136, %v219, 0
    %227 = vmatprep.subr.mxu0 0.0
    %228 = vmatpush1.msra.mxu0 %v220
    %229 = vmatprep.subr.mxu0 0.0
    %230 = vmatpush1.msra.mxu0 %v221
    %231 = vmatprep.subr.mxu0 0.0
    %232 = vmatpush1.msra.mxu0 %v222
    %233 = vmatprep.subr.mxu0 0.0
    %234 = vmatpush1.msra.mxu0 %v223
    %235 = vmatprep.subr.mxu0 0.0
    %236 = vmatpush1.msra.mxu0 0.0
    %237 = vmatprep.subr.mxu0 0.0
    %238 = vmatpush1.msra.mxu0 0.0
    %239 = vmatprep.subr.mxu0 0.0
    %240 = vmatpush1.msra.mxu0 0.0
    %241 = vmatprep.subr.mxu0 0.0
    %242 = vmatpush1.msra.mxu0 0.0
    %243 = vmatprep.subr.mxu0 0.0
    %244 = vmatpush1.msra.mxu0 0.0
    %245 = vmatprep.subr.mxu0 0.0
    %246 = vmatpush1.msra.mxu0 0.0
    %247 = vmatprep.subr.mxu0 0.0
    %248 = vmatpush1.msra.mxu0 0.0
    %249 = vmatprep.subr.mxu0 0.0
    %250 = vmatpush1.msra.mxu0 0.0
    %251 = vmatprep.subr.mxu0 0.0
    %252 = vmatpush1.msra.mxu0 0.0
    %253 = vmatprep.subr.mxu0 0.0
    %254 = vmatpush1.msra.mxu0 0.0
    %255 = vmatprep.subr.mxu0 0.0
    %256 = vmatpush1.msra.mxu0 0.0
    %257 = vmatprep.subr.mxu0 0.0
    %258 = vmatpush1.msra.mxu0 0.0
    %259 = vmatprep.subr.mxu0 0.0
    %260 = vmatpush1.msra.mxu0 0.0
    %261 = vmatprep.subr.mxu0 0.0
    %262 = vmatpush1.msra.mxu0 0.0
    %263 = vmatprep.subr.mxu0 0.0
    %264 = vmatpush1.msra.mxu0 0.0
    %265 = vmatprep.subr.mxu0 0.0
    %266 = vmatpush1.msra.mxu0 0.0
    %267 = vmatprep.subr.mxu0 0.0
    %268 = vmatpush1.msra.mxu0 0.0
    %269 = vmatprep.subr.mxu0 0.0
    %270 = vmatpush1.msra.mxu0 0.0
    %271 = vmatprep.subr.mxu0 0.0
    %272 = vmatpush1.msra.mxu0 0.0
    %273 = vmatprep.subr.mxu0 0.0
    %274 = vmatpush1.msra.mxu0 0.0
    %275 = vmatprep.subr.mxu0 0.0
    %276 = vmatpush1.msra.mxu0 0.0
    %277 = vmatprep.subr.mxu0 0.0
    %278 = vmatpush1.msra.mxu0 0.0
    %279 = vmatprep.subr.mxu0 0.0
    %280 = vmatpush1.msra.mxu0 0.0
    %281 = vmatprep.subr.mxu0 0.0
    %282 = vmatpush1.msra.mxu0 0.0
    %283 = vmatprep.subr.mxu0 0.0
    %284 = vmatpush1.msra.mxu0 0.0
    %285 = vmatprep.subr.mxu0 0.0
    %286 = vmatpush1.msra.mxu0 0.0
    %287 = vmatprep.subr.mxu0 0.0
    %288 = vmatpush1.msra.mxu0 0.0
    %289 = vmatprep.subr.mxu0 0.0
    %290 = vmatpush1.msra.mxu0 0.0
    %291 = vmatprep.mubr.f32.mxu0 0.0
    %292 = vmatmul.mubr.f32.gmra.mrb[0].mxu0 %v225
    %v293 = vpop.f32.mrb[0].mxu0
    %v294 = vadd.f32 0.0, %v293
    %v295 = vpop.f32.mrb[0].mxu0
    %296 = vdwg.mxu0
    %v297 = vmul.f32 %v216, %v294
    %vm298 = vcmask 130048
    %v299 = vsel %vm298, %v297, 0.0
    %v300 = vrot.slane %v299, 4
    %v301 = vadd.f32 %v299, %v300
    %v302 = vrot.slane %v301, 2
    %v303 = vadd.f32 %v301, %v302
    %v304 = vrot.slane %v303, 1
    %v305 = vadd.f32 %v303, %v304
    %v306 = vmul.f32 %v305, 0.125
    %v307 = vsub.f32 %v297, %v306
    %v308 = vmul.f32 %v307, %v307
    %v309 = vsel %vm298, %v308, 0.0
    %v310 = vrot.slane %v309, 4
    %v311 = vadd.f32 %v309, %v310
    %v312 = vrot.slane %v311, 2
    %v313 = vadd.f32 %v311, %v312
    %v314 = vrot.slane %v313, 1
    %v315 = vadd.f32 %v313, %v314
    %v316 = vmul.f32 %v315, 0.125
    %v317 = vadd.f32 %v316, 0.001
    %v318 = vrsqrt.pop %v317
    %v319 = vmul.f32 %v307, %v318
    %v320 = vld [vmem:[%s6] sm:$0x1]
    %v322 = vlaneseq
    %v323 = vshrl.u32 %v322, 7
    %v324 = vsub.s32 0, %v323
    %v325 = vrot.slane %v320, %v324
    %v327 = vmul.f32 %v319, %v325
    %v328 = vld [vmem:[%s7] sm:$0x1]
    %v330 = vlaneseq
    %v331 = vshrl.u32 %v330, 7
    %v332 = vsub.s32 0, %v331
    %v333 = vrot.slane %v328, %v332
    %v335 = vadd.f32 %v327, %v333
    %v336 = vsel %vm298, %v335, -inf
    %337 = vmax.xlane.f32.xlu0 %v336
    %v338 = vpop.xlane.xlu0 %337
    %v339 = vsub.f32 %v335, %v338
    %v340 = vmul.f32 %v339, 1.442695
    %v341 = vpow.pop %v340
    %v342 = vsel %vm298, %v341, 0.0
    %343 = vadd.xlane.f32.xlu0 %v342
    %v344 = vpop.xlane.xlu0 %343
    %v345 = vrcp.pop %v344
    %v346 = vmul.f32 %v341, %v345
    %347 = vst.msk [vmem:[#allocation2] sm:$0xff] %vm298, %v346
    // Predicated region
    $region34: #{_forward.1} parent=1 // pred_check
      _
    $region35: #{_forward.1} parent=1 // pred_check_branch
      %349 = sbr.rel (0) target = $region37
    $region36: #{_forward.1} parent=1 // pred_region
      _
    $region37: #{_forward.1} parent=1 // pred_fallthru
      _
    // Predicated region
    $region38: #{_forward.1} parent=1 // pred_check
      _
    $region39: #{_forward.1} parent=1 // pred_check_branch
      %351 = sbr.rel (0) target = $region41
    $region40: #{_forward.1} parent=1 // pred_region
      %s353 = ssub.s32 128, 128
      %354 = vsyncadd [#allocation3], %s353
      %s356 = sshll.u32 [#allocation2], 4
      %s357 = int_to_ptr.vmem [resolvable:$true] %s356
      %359 = dma.vmem_to_hbm [thread:$0]  %s357, 128, %s9, [#allocation3]
    $region41: #{_forward.1} parent=1 // pred_fallthru
      _
    // Predicated region
    $region42: #{_forward.1} parent=1 // pred_check
      _
    $region43: #{_forward.1} parent=1 // pred_check_branch
      %361 = sbr.rel (0) target = $region45
    $region44: #{_forward.1} parent=1 // pred_region
      _
    $region45: #{_forward.1} parent=1 // pred_fallthru
      _
    // Predicated region
    $region46: #{_forward.1} parent=1 // pred_check
      _
    $region47: #{_forward.1} parent=1 // pred_check_branch
      %363 = sbr.rel (0) target = $region49
    $region48: #{_forward.1} parent=1 // pred_region
      %364 = dma.done [#allocation3], 128
    $region49: #{_forward.1} parent=1 // pred_fallthru
      _
    %365 = vsyncpa [#allocation3], 1

</llo_original>
